<compile_context>
chip_gen: v7x
topology: tpu7x:2x2x1
jax: 0.10.0
libtpu: 0.0.40
codegen_flags: <defaults>
</compile_context>

<pallas_src>
import jax
import jax.numpy as jnp
from jax import lax
from jax.experimental import pallas as pl
from jax.experimental.pallas import tpu as pltpu


def _head_kernel(x_ref, w_ref, b_ref, o_ref):
    # x_ref: (C, hw_tile)      one batch element, all channels, a tile of pixels
    # w_ref: (out_c, C)        1x1-conv weight, PyTorch-native layout
    # b_ref: (out_c, 1)
    # o_ref: (out_c, hw_tile)  lane-dense: pixels on the 128-lane axis
    acc = jnp.dot(w_ref[...], x_ref[...], preferred_element_type=jnp.float32)
    o_ref[...] = (acc + b_ref[...]).astype(o_ref.dtype)


def _conv1x1_nchw(x, weight, bias):
    """1x1 conv over NCHW input; returns channels-first (N, out_c, H*W)."""
    N, C, H, W = x.shape
    out_c = weight.shape[0]
    assert weight.shape == (out_c, C)
    HW = H * W

    x3 = x.reshape(N, C, HW)                   # free, layout-preserving
    b2 = bias.reshape(out_c, 1).astype(jnp.float32)

    # --- Tile sizing: gated by actual VMEM capacity ---------------------------
    try:
        vmem_cap = pltpu.get_tpu_info().vmem_capacity_bytes
    except Exception:
        vmem_cap = 64 * 1024 * 1024            # conservative fallback
    if vmem_cap >= 96 * 1024 * 1024:           # v5e / v6e: 128 MiB per core
        in_budget = 12 * 1024 * 1024
        vmem_limit = 64 * 1024 * 1024
    else:                                      # v7x: 64 MiB per TensorCore
        in_budget = 8 * 1024 * 1024
        vmem_limit = 48 * 1024 * 1024
    # 2x(input tile) + 2x(sublane-padded output tile) + weights stays well
    # under vmem_limit for these budgets (output is ~out_c/C of input bytes).

    itemsize = jnp.dtype(x.dtype).itemsize
    bytes_per_pixel = C * itemsize
    tile_from_budget = max(128, ((in_budget // bytes_per_pixel) // 128) * 128)
    hw_tile = HW if HW <= tile_from_budget else tile_from_budget

    # v7x shards "parallel" grid axes across its 2 TensorCores: make sure the
    # grid has at least 2 steps so neither core idles.
    while N * pl.cdiv(HW, hw_tile) < 2 and hw_tile > 128:
        hw_tile = max(128, ((hw_tile // 2) // 128) * 128)

    grid = (N, pl.cdiv(HW, hw_tile))           # ragged tail masked by Pallas

    out3 = pl.pallas_call(
        _head_kernel,
        out_shape=jax.ShapeDtypeStruct((N, out_c, HW), x.dtype),
        grid_spec=pltpu.PrefetchScalarGridSpec(
            num_scalar_prefetch=0,
            grid=grid,
            in_specs=[
                pl.BlockSpec((None, C, hw_tile), lambda n, j: (n, 0, j)),
                pl.BlockSpec((out_c, C), lambda n, j: (0, 0)),
                pl.BlockSpec((out_c, 1), lambda n, j: (0, 0)),
            ],
            out_specs=pl.BlockSpec((None, out_c, hw_tile), lambda n, j: (n, 0, j)),
        ),
        compiler_params=pltpu.CompilerParams(
            dimension_semantics=("parallel", "parallel"),
            vmem_limit_bytes=vmem_limit,
        ),
    )(x3, weight, b2)
    return out3                                 # (N, out_c, HW)


def bbox_head(x, weight, bias):
    """RetinaFace BboxHead forward.

    x:      (N, C, H, W)
    weight: (out_c, C)   -- 1x1 conv kernel with the trailing (1, 1) squeezed
    bias:   (out_c,)
    returns (N, H*W*num_anchors, 4), with out_c == num_anchors * 4
    """
    N, C, H, W = x.shape
    out_c = weight.shape[0]
    assert out_c % 4 == 0
    out3 = _conv1x1_nchw(x, weight, bias)       # (N, out_c, H*W)
    out = jnp.transpose(out3, (0, 2, 1))        # (N, H*W, out_c): output bytes only
    return out.reshape(N, H * W * (out_c // 4), 4)


def retinaface_heads(x, w_bbox, b_bbox, w_cls, b_cls, w_ldm, b_ldm):
    """Fused BboxHead + ClassHead + LandmarkHead: one pallas_call, one x read."""
    N, C, H, W = x.shape
    n_bbox, n_cls, n_ldm = w_bbox.shape[0], w_cls.shape[0], w_ldm.shape[0]
    w_all = jnp.concatenate([w_bbox, w_cls, w_ldm], axis=0)
    b_all = jnp.concatenate([b_bbox, b_cls, b_ldm], axis=0)
    out3 = _conv1x1_nchw(x, w_all, b_all)       # (N, n_bbox+n_cls+n_ldm, H*W)
    out = jnp.transpose(out3, (0, 2, 1))        # (N, H*W, sum_out_c)
    o_bbox = out[..., :n_bbox].reshape(N, H * W * (n_bbox // 4), 4)
    o_cls = out[..., n_bbox:n_bbox + n_cls].reshape(N, H * W * (n_cls // 2), 2)
    o_ldm = out[..., n_bbox + n_cls:].reshape(N, H * W * (n_ldm // 10), 10)
    return o_bbox, o_cls, o_ldm


def _head_ref(x, weight, bias, last):
    out = jnp.einsum("nchw,oc->nhwo", x, weight,
                     precision=lax.Precision.HIGHEST) + bias
    n, h, w, o = out.shape
    return out.reshape(n, h * w * (o // last), last)


def bbox_head_ref(x, weight, bias):
    return _head_ref(x, weight, bias, 4)


if __name__ == "__main__":
    key = jax.random.PRNGKey(0)
    k1, k2, k3, k4, k5, k6, k7 = jax.random.split(key, 7)

    # Small shapes consistent with the module (inchannels scaled down).
    N, C, H, W = 2, 128, 16, 16
    num_anchors = 3
    out_c = num_anchors * 4

    x = jax.random.normal(k1, (N, C, H, W), dtype=jnp.float32)
    w_bbox = jax.random.normal(k2, (out_c, C), dtype=jnp.float32) * (1.0 / (C ** 0.5))
    b_bbox = jax.random.normal(k3, (out_c,), dtype=jnp.float32) * 0.1

    out = bbox_head(x, w_bbox, b_bbox)
    out = jax.block_until_ready(out)

    ref = bbox_head_ref(x, w_bbox, b_bbox)
    assert out.shape == (N, H * W * num_anchors, 4), out.shape
    assert out.dtype == x.dtype
    # Tolerance documents MXU default f32 precision vs. HIGHEST-precision ref.
    assert jnp.allclose(out, ref, atol=2e-2, rtol=2e-2), float(jnp.max(jnp.abs(out - ref)))

    # Fused sibling heads (ClassHead: A*2, LandmarkHead: A*10) through the same
    # kernel -- the dominant HBM read of x is amortized across all three heads.
    w_cls = jax.random.normal(k4, (num_anchors * 2, C), dtype=jnp.float32) * (1.0 / (C ** 0.5))
    b_cls = jax.random.normal(k5, (num_anchors * 2,), dtype=jnp.float32) * 0.1
    w_ldm = jax.random.normal(k6, (num_anchors * 10, C), dtype=jnp.float32) * (1.0 / (C ** 0.5))
    b_ldm = jax.random.normal(k7, (num_anchors * 10,), dtype=jnp.float32) * 0.1

    o_bbox, o_cls, o_ldm = jax.block_until_ready(
        retinaface_heads(x, w_bbox, b_bbox, w_cls, b_cls, w_ldm, b_ldm))
    assert o_bbox.shape == (N, H * W * num_anchors, 4)
    assert o_cls.shape == (N, H * W * num_anchors, 2)
    assert o_ldm.shape == (N, H * W * num_anchors, 10)
    assert jnp.allclose(o_bbox, ref, atol=2e-2, rtol=2e-2)
    assert jnp.allclose(o_cls, _head_ref(x, w_cls, b_cls, 2), atol=2e-2, rtol=2e-2)
    assert jnp.allclose(o_ldm, _head_ref(x, w_ldm, b_ldm, 10), atol=2e-2, rtol=2e-2)

    print("KERNEL_OK")
</pallas_src>

<mosaic_0001>
module attributes {stable_mosaic.version = 11 : i64} {
  func.func @_head_kernel(%arg0: i32, %arg1: i32, %arg2: memref<1x128x256xf32, #tpu.memory_space<vmem>>, %arg3: memref<12x128xf32, #tpu.memory_space<vmem>>, %arg4: memref<12x1xf32, #tpu.memory_space<vmem>>, %arg5: memref<1x12x256xf32, #tpu.memory_space<vmem>>) attributes {dimension_semantics = [#tpu.dimension_semantics<parallel>, #tpu.dimension_semantics<parallel>], iteration_bounds = array<i64: 2, 1>, scalar_prefetch = 0 : i64, scratch_operands = 0 : i64, tpu.core_type = #tpu.core_type<tc>, window_params = [{transform_indices = @transform_0, window_bounds = array<i64: 1, 128, 256>}, {pipeline_mode = #tpu.pipeline_mode<synchronous>, transform_indices = @transform_1, window_bounds = array<i64: 12, 128>}, {pipeline_mode = #tpu.pipeline_mode<synchronous>, transform_indices = @transform_2, window_bounds = array<i64: 12, 1>}, {transform_indices = @transform_3, window_bounds = array<i64: 1, 12, 256>}]} {
    %c0 = arith.constant 0 : index
    %c0_0 = arith.constant 0 : index
    %0 = vector.load %arg3[%c0, %c0_0] : memref<12x128xf32, #tpu.memory_space<vmem>>, vector<12x128xf32>
    %c0_1 = arith.constant 0 : index
    %c0_2 = arith.constant 0 : index
    %c0_3 = arith.constant 0 : index
    %1 = vector.load %arg2[%c0_1, %c0_2, %c0_3] : memref<1x128x256xf32, #tpu.memory_space<vmem>>, vector<1x128x256xf32>
    %2 = vector.shape_cast %1 : vector<1x128x256xf32> to vector<128x256xf32>
    %cst = arith.constant dense<0.000000e+00> : vector<12x256xf32>
    %3 = tpu.matmul %0, %2, %cst {dimension_numbers = #tpu.dot_dimension_numbers<[1], [0], [0], [1], [0, 0, 1, 1], [], []>} : vector<12x128xf32>, vector<128x256xf32>, vector<12x256xf32> -> vector<12x256xf32>
    %c0_4 = arith.constant 0 : index
    %c0_5 = arith.constant 0 : index
    %4 = vector.load %arg4[%c0_4, %c0_5] : memref<12x1xf32, #tpu.memory_space<vmem>>, vector<12x1xf32>
    %5 = vector.broadcast %4 : vector<12x1xf32> to vector<12x256xf32>
    %6 = arith.addf %3, %5 : vector<12x256xf32>
    %c0_6 = arith.constant 0 : index
    %c0_7 = arith.constant 0 : index
    %c0_8 = arith.constant 0 : index
    %7 = vector.load %arg5[%c0_6, %c0_7, %c0_8] : memref<1x12x256xf32, #tpu.memory_space<vmem>>, vector<1x12x256xf32>
    %8 = vector.shape_cast %7 : vector<1x12x256xf32> to vector<12x256xf32>
    %9 = vector.shape_cast %6 : vector<12x256xf32> to vector<1x12x256xf32>
    tpu.vector_store %arg5[%c0_6, %c0_7, %c0_8], %9 {strides = array<i32>} : memref<1x12x256xf32, #tpu.memory_space<vmem>>, vector<1x12x256xf32>,
    return
  }
  func.func @transform_0(%arg0: i32, %arg1: i32) -> (i32, i32, i32) {
    %c0_i32 = arith.constant 0 : i32
    %c0_i32_0 = arith.constant 0 : i32
    return %arg0, %c0_i32, %arg1 : i32, i32, i32
  }
  func.func @transform_1(%arg0: i32, %arg1: i32) -> (i32, i32) {
    %c0_i32 = arith.constant 0 : i32
    %c0_i32_0 = arith.constant 0 : i32
    %c0_i32_1 = arith.constant 0 : i32
    return %c0_i32, %c0_i32_0 : i32, i32
  }
  func.func @transform_2(%arg0: i32, %arg1: i32) -> (i32, i32) {
    %c0_i32 = arith.constant 0 : i32
    %c0_i32_0 = arith.constant 0 : i32
    %c0_i32_1 = arith.constant 0 : i32
    return %c0_i32, %c0_i32_0 : i32, i32
  }
  func.func @transform_3(%arg0: i32, %arg1: i32) -> (i32, i32, i32) {
    %c0_i32 = arith.constant 0 : i32
    %c0_i32_0 = arith.constant 0 : i32
    return %arg0, %c0_i32, %arg1 : i32, i32, i32
  }
}

</mosaic_0001>

<llo_original>
// kernel: tpu_custom_call.1
$region0: #{tpu_custom_call.1}
  #allocation0 [shape = 'u32[]', space=smem, size = 0x4, offset = 0x4, fixed_abs, tag = 'smem constant byte address 0x4 - core index']
  #allocation1 [shape = 'u32[144,128]{1,0:T(1,128)}', space=vmem, size = 0x12000, scoped, tag = 'internal scratch']
  %s0 = inlined_call_operand.hbm [shape: f32[2,128,256], index: 0, kind: input, shape index: {}]
  %s1 = inlined_call_operand.vmem [shape: f32[12,128], index: 1, kind: input, shape index: {}]
  %s2 = inlined_call_operand.vmem [shape: f32[12,1], index: 2, kind: input, shape index: {}]
  %s3 = inlined_call_operand.vmem [shape: f32[2,12,256], index: 3, kind: output, shape index: {}]
  %s4 = sld [smem:[#allocation0]]
  $region49: #{tpu_custom_call.1} parent=0
    _
  %s6 = ssub.s32 1, %s4
  %s7 = scalar_select 0, %s6, %s4
  $region1: #{tpu_custom_call.1} parent=0
    #allocation2 [shape = 'u8[262144]{0}', space=vmem, size = 0x40000, scoped, tag = 'input window, operand 0']
    #allocation3 [shape = 's32[2]{0}', space=sflag, size = 0x8, scoped, tag = 'scoped memory for tpu_custom_call.1']
    %8 = vsyncpa [#allocation3], 0
    %s9 = scalar_lea.sflag [#allocation3], 1
    %10 = vsyncpa %s9, 0
    loop: start=0, step=1, limit=4
    $region2: #{tpu_custom_call.1} parent=1 // loop_pre_header
      _
    $region3: #{tpu_custom_call.1} parent=1 // loop_header
      %s12 = sphi 0, %s16
      %p13 = scmp.ge.s32.totalorder %s12, 4
      %s19 = sphi 0, %s31
      %s20 = sphi 0, %s27
      %s21 = sphi 0, %s19
      %s22 = sphi 0, %s20
      %s23 = sphi 0, %s21
      %s24 = sphi 0, %s22
      %s36 = sphi 0, %s38
      %s39 = sphi 0, %s36
      %s40 = sphi 0, %s39
      %s56 = sphi 0, %s40
      %s60 = sphi 0, %s60
      %s62 = sphi 0, %s60
      %s63 = sphi 0, %s62
      %s77 = sphi 0, %s63
      %s81 = sphi 0, %s81
      %s83 = sphi 0, %s81
      %s84 = sphi 0, %s83
      %s98 = sphi 0, %s84
      %s106 = sphi 0, %s108
      %s109 = sphi 0, %s106
      %s110 = sphi 0, %s109
      %s126 = sphi 0, %s110
    $region4: #{tpu_custom_call.1} parent=1 // loop_header_branch
      %15 = sbr.rel (%p13) target = $region8
    $region5: #{tpu_custom_call.1} parent=1 // loop_body
      %s17 = ssub.s32 %s12, 1
      %s18 = ssub.s32 %s12, 2
      %s25 = sadd.s32 1, %s20
      %p26 = scmp.ge.s32.totalorder %s25, 1
      %s27 = scalar_select %p26, 0, %s25
      %s28 = sadd.s32 1, %s19
      %s29 = scalar_select %p26, %s28, %s19
      %p30 = scmp.ge.s32.totalorder %s29, 2
      %s31 = scalar_select %p30, 0, %s29
      %s32 = ssub.s32 %s19, %s31
      %s33 = ssub.s32 %s20, %s27
      %s34 = sor.u32 %s32, %s33
      %p35 = scmp.eq.s32.totalorder %s34, 0
      %s37 = sadd.s32 %s36, 1
      %s38 = scalar_select %p35, %s36, %s37
      %p41 = pneg %p35
      %p42 = scmp.eq.s32.totalorder %s12, 1
      %p43 = por %p41, %p42
      %p44 = scmp.ne.s32.totalorder %s36, %s39
      %p45 = scmp.eq.s32.totalorder %s12, 0
      %p46 = por %p44, %p45
      %p47 = scmp.ne.s32.totalorder %s36, %s39
      %p48 = scmp.eq.s32.totalorder %s17, 1
      %p49 = por %p47, %p48
      %p50 = scmp.ne.s32.totalorder %s39, %s40
      %p51 = scmp.eq.s32.totalorder %s17, 0
      %p52 = por %p50, %p51
      %p53 = scmp.ne.s32.totalorder %s39, %s40
      %p54 = scmp.eq.s32.totalorder %s18, 1
      %p55 = por %p53, %p54
      %p57 = scmp.ne.s32.totalorder %s40, %s56
      %p58 = scmp.eq.s32.totalorder %s18, 0
      %p59 = por %p57, %p58
      %s61 = sadd.s32 %s60, 1
      %p64 = scmp.eq.s32.totalorder %s12, 1
      %p65 = scmp.ne.s32.totalorder %s60, %s62
      %p66 = scmp.eq.s32.totalorder %s12, 0
      %p67 = por %p65, %p66
      %p68 = scmp.ne.s32.totalorder %s60, %s62
      %p69 = scmp.eq.s32.totalorder %s17, 1
      %p70 = por %p68, %p69
      %p71 = scmp.ne.s32.totalorder %s62, %s63
      %p72 = scmp.eq.s32.totalorder %s17, 0
      %p73 = por %p71, %p72
      %p74 = scmp.ne.s32.totalorder %s62, %s63
      %p75 = scmp.eq.s32.totalorder %s18, 1
      %p76 = por %p74, %p75
      %p78 = scmp.ne.s32.totalorder %s63, %s77
      %p79 = scmp.eq.s32.totalorder %s18, 0
      %p80 = por %p78, %p79
      %s82 = sadd.s32 %s81, 1
      %p85 = scmp.eq.s32.totalorder %s12, 1
      %p86 = scmp.ne.s32.totalorder %s81, %s83
      %p87 = scmp.eq.s32.totalorder %s12, 0
      %p88 = por %p86, %p87
      %p89 = scmp.ne.s32.totalorder %s81, %s83
      %p90 = scmp.eq.s32.totalorder %s17, 1
      %p91 = por %p89, %p90
      %p92 = scmp.ne.s32.totalorder %s83, %s84
      %p93 = scmp.eq.s32.totalorder %s17, 0
      %p94 = por %p92, %p93
      %p95 = scmp.ne.s32.totalorder %s83, %s84
      %p96 = scmp.eq.s32.totalorder %s18, 1
      %p97 = por %p95, %p96
      %p99 = scmp.ne.s32.totalorder %s84, %s98
      %p100 = scmp.eq.s32.totalorder %s18, 0
      %p101 = por %p99, %p100
      %s102 = ssub.s32 %s19, %s31
      %s103 = ssub.s32 %s20, %s27
      %s104 = sor.u32 %s102, %s103
      %p105 = scmp.eq.s32.totalorder %s104, 0
      %s107 = sadd.s32 %s106, 1
      %s108 = scalar_select %p105, %s106, %s107
      %p111 = pneg %p105
      %p112 = scmp.eq.s32.totalorder %s12, 1
      %p113 = por %p111, %p112
      %p114 = scmp.ne.s32.totalorder %s106, %s109
      %p115 = scmp.eq.s32.totalorder %s12, 0
      %p116 = por %p114, %p115
      %p117 = scmp.ne.s32.totalorder %s106, %s109
      %p118 = scmp.eq.s32.totalorder %s17, 1
      %p119 = por %p117, %p118
      %p120 = scmp.ne.s32.totalorder %s109, %s110
      %p121 = scmp.eq.s32.totalorder %s17, 0
      %p122 = por %p120, %p121
      %p123 = scmp.ne.s32.totalorder %s109, %s110
      %p124 = scmp.eq.s32.totalorder %s18, 1
      %p125 = por %p123, %p124
      %p127 = scmp.ne.s32.totalorder %s110, %s126
      %p128 = scmp.eq.s32.totalorder %s18, 0
      %p129 = por %p127, %p128
      %p130 = scmp.le.s32.totalorder 1, %s12
      %p131 = scmp.lt.s32.totalorder %s12, 3
      %p132 = pnand %p130, %p131
      %p133 = pneg %p132
      // Predicated region
      $region9: #{tpu_custom_call.1} parent=5 // pred_check
        _
      $region10: #{tpu_custom_call.1} parent=5 // pred_check_branch
        %135 = sbr.rel (%p132) target = $region12
      $region11: #{tpu_custom_call.1} parent=5 // pred_region
        %s136 = ssub.s32 %s12, 1
        // Predicated region
        $region13: #{tpu_custom_call.1} parent=11 // pred_check
          %p137 = pneg %p73
        $region14: #{tpu_custom_call.1} parent=11 // pred_check_branch
          %139 = sbr.rel (%p137) target = $region16
        $region15: #{tpu_custom_call.1} parent=11 // pred_region
          _
        $region16: #{tpu_custom_call.1} parent=11 // pred_fallthru
          _
        // Predicated region
        $region17: #{tpu_custom_call.1} parent=11 // pred_check
          %p140 = pneg %p94
        $region18: #{tpu_custom_call.1} parent=11 // pred_check_branch
          %142 = sbr.rel (%p140) target = $region20
        $region19: #{tpu_custom_call.1} parent=11 // pred_region
          _
        $region20: #{tpu_custom_call.1} parent=11 // pred_fallthru
          _
      $region12: #{tpu_custom_call.1} parent=5 // pred_fallthru
        _
      %p143 = scmp.lt.s32.totalorder %s12, 2
      // Predicated region
      $region21: #{tpu_custom_call.1} parent=5 // pred_check
        %p144 = pneg %p143
      $region22: #{tpu_custom_call.1} parent=5 // pred_check_branch
        %146 = sbr.rel (%p144) target = $region24
      $region23: #{tpu_custom_call.1} parent=5 // pred_region
        // Predicated region
        $region25: #{tpu_custom_call.1} parent=23 // pred_check
          %p147 = pneg %p46
        $region26: #{tpu_custom_call.1} parent=23 // pred_check_branch
          %149 = sbr.rel (%p147) target = $region28
        $region27: #{tpu_custom_call.1} parent=23 // pred_region
          %s150 = sand.u32 %s36, 1
          %s151 = scalar_lea.sflag [#allocation3], %s150
          %s152 = sand.u32 %s36, 1
          %s153 = smul.addr %s152, 256
          %s154 = scalar_lea.vmem [#allocation2], %s153
          %s155 = smul.u32 2, %s20
          %s157 = ssub.s32 4096, 4096
          %158 = vsyncadd %s151, %s157
          %s159 = smul.addr %s19, 32
          %s160 = sadd.s32 %s155, %s159
          %s161 = smul.addr %s160, 128
          %s162 = scalar_lea.hbm %s0, %s161
          %s163 = sshll.u32 %s154, 4
          %s164 = int_to_ptr.vmem [resolvable:$true] %s163
          %169 = dma.hbm_to_vmem [thread:$0]  %s162, 4096, %s164, %s151, 256, 256, 16
        $region28: #{tpu_custom_call.1} parent=23 // pred_fallthru
          _
      $region24: #{tpu_custom_call.1} parent=5 // pred_fallthru
        _
      %p170 = scmp.le.s32.totalorder 1, %s12
      %p171 = scmp.lt.s32.totalorder %s12, 3
      %p172 = pnand %p170, %p171
      %p173 = pneg %p172
      // Predicated region
      $region29: #{tpu_custom_call.1} parent=5 // pred_check
        _
      $region30: #{tpu_custom_call.1} parent=5 // pred_check_branch
        %175 = sbr.rel (%p172) target = $region32
      $region31: #{tpu_custom_call.1} parent=5 // pred_region
        %s176 = ssub.s32 %s12, 1
        %s177 = sand.u32 %s39, 1
        %s178 = scalar_lea.sflag [#allocation3], %s177
        %s179 = sand.u32 %s39, 1
        %s180 = smul.addr %s179, 256
        %s181 = scalar_lea.vmem [#allocation2], %s180
        // Predicated region
        $region33: #{tpu_custom_call.1} parent=31 // pred_check
          %p182 = pneg %p52
        $region34: #{tpu_custom_call.1} parent=31 // pred_check_branch
          %184 = sbr.rel (%p182) target = $region36
        $region35: #{tpu_custom_call.1} parent=31 // pred_region
          %185 = dma.done %s178, 4096
        $region36: #{tpu_custom_call.1} parent=31 // pred_fallthru
          _
        %s186 = sand.u32 %s39, 1
        %s187 = scalar_lea.sflag [#allocation3], %s186
        %s188 = sand.u32 %s39, 1
        %s189 = smul.addr %s188, 256
        %s190 = scalar_lea.vmem [#allocation2], %s189
        %p191 = pneg %p52
        %p192 = pneg %p49
        %p193 = pneg %p73
        %p194 = pneg %p70
        %p195 = pneg %p94
        %p196 = pneg %p91
        %p197 = pneg %p122
        %p198 = pneg %p119
        %s199 = smul.u32 2, %s22
        %p200 = scmp.lt.s32.totalorder %s21, 1
        %s201 = scalar_select %p200, %s21, 1
        %p202 = scmp.lt.s32.totalorder %s199, 1
        %s203 = scalar_select %p202, %s199, 1
        %s204 = smul.addr %s201, 4
        %s205 = sadd.s32 %s203, %s204
        %s206 = smul.addr %s205, 8
        %s207 = scalar_lea.vmem %s3, %s206
        %s208 = smul.u32 2, %s22
        %s209 = smul.u32 2, %s22
        %p210 = scmp.lt.s32.totalorder %s21, 1
        %s211 = scalar_select %p210, %s21, 1
        %p212 = scmp.lt.s32.totalorder %s209, 1
        %s213 = scalar_select %p212, %s209, 1
        %s214 = smul.addr %s211, 4
        %s215 = sadd.s32 %s213, %s214
        %s216 = smul.addr %s215, 8
        %s217 = scalar_lea.vmem %s3, %s216
        %s218 = smul.u32 2, %s22
        %v219 = vld [vmem:[%s1] sm:$0xff]
        %v220 = vld [vmem:[%s1 + $0x8] sm:$0xf]
        %v221 = vld [vmem:[%s181] sm:$0xff]
        %v222 = vld [vmem:[%s181 + $0x8] sm:$0xff]
        %v223 = vld [vmem:[%s181 + $0x10] sm:$0xff]
        %v224 = vld [vmem:[%s181 + $0x18] sm:$0xff]
        %v225 = vld [vmem:[%s181 + $0x20] sm:$0xff]
        %v226 = vld [vmem:[%s181 + $0x28] sm:$0xff]
        %v227 = vld [vmem:[%s181 + $0x30] sm:$0xff]
        %v228 = vld [vmem:[%s181 + $0x38] sm:$0xff]
        %v229 = vld [vmem:[%s181 + $0x40] sm:$0xff]
        %v230 = vld [vmem:[%s181 + $0x48] sm:$0xff]
        %v231 = vld [vmem:[%s181 + $0x50] sm:$0xff]
        %v232 = vld [vmem:[%s181 + $0x58] sm:$0xff]
        %v233 = vld [vmem:[%s181 + $0x60] sm:$0xff]
        %v234 = vld [vmem:[%s181 + $0x68] sm:$0xff]
        %v235 = vld [vmem:[%s181 + $0x70] sm:$0xff]
        %v236 = vld [vmem:[%s181 + $0x78] sm:$0xff]
        %v237 = vld [vmem:[%s181 + $0x80] sm:$0xff]
        %v238 = vld [vmem:[%s181 + $0x88] sm:$0xff]
        %v239 = vld [vmem:[%s181 + $0x90] sm:$0xff]
        %v240 = vld [vmem:[%s181 + $0x98] sm:$0xff]
        %v241 = vld [vmem:[%s181 + $0xa0] sm:$0xff]
        %v242 = vld [vmem:[%s181 + $0xa8] sm:$0xff]
        %v243 = vld [vmem:[%s181 + $0xb0] sm:$0xff]
        %v244 = vld [vmem:[%s181 + $0xb8] sm:$0xff]
        %v245 = vld [vmem:[%s181 + $0xc0] sm:$0xff]
        %v246 = vld [vmem:[%s181 + $0xc8] sm:$0xff]
        %v247 = vld [vmem:[%s181 + $0xd0] sm:$0xff]
        %v248 = vld [vmem:[%s181 + $0xd8] sm:$0xff]
        %v249 = vld [vmem:[%s181 + $0xe0] sm:$0xff]
        %v250 = vld [vmem:[%s181 + $0xe8] sm:$0xff]
        %v251 = vld [vmem:[%s181 + $0xf0] sm:$0xff]
        %v252 = vld [vmem:[%s181 + $0xf8] sm:$0xff]
        %v253 = vld [vmem:[%s2] sm:$0xff]
        %v254 = vld [vmem:[%s2 + $0x8] sm:$0xf]
        %256 = vset.pattern.permute.xlu0 0
        %257 = vperm.xlu0 %256, %v253
        %v258 = vpop.permute.xlu0 %257
        %261 = vset.pattern.permute.xlu0 0
        %262 = vperm.xlu0 %261, %v254
        %v263 = vpop.permute.xlu0 %262
        %265 = vmatprep.subr.mxu0 %v222
        %266 = vmatpush1.msra.mxu0 %v221
        %267 = vmatprep.subr.mxu0 %v224
        %268 = vmatpush1.msra.mxu0 %v223
        %269 = vmatprep.subr.mxu0 %v226
        %270 = vmatpush1.msra.mxu0 %v225
        %271 = vmatprep.subr.mxu0 %v228
        %272 = vmatpush1.msra.mxu0 %v227
        %273 = vmatprep.subr.mxu0 %v230
        %274 = vmatpush1.msra.mxu0 %v229
        %275 = vmatprep.subr.mxu0 %v232
        %276 = vmatpush1.msra.mxu0 %v231
        %277 = vmatprep.subr.mxu0 %v234
        %278 = vmatpush1.msra.mxu0 %v233
        %279 = vmatprep.subr.mxu0 %v236
        %280 = vmatpush1.msra.mxu0 %v235
        %281 = vmatprep.subr.mxu0 %v238
        %282 = vmatpush1.msra.mxu0 %v237
        %283 = vmatprep.subr.mxu0 %v240
        %284 = vmatpush1.msra.mxu0 %v239
        %285 = vmatprep.subr.mxu0 %v242
        %286 = vmatpush1.msra.mxu0 %v241
        %287 = vmatprep.subr.mxu0 %v244
        %288 = vmatpush1.msra.mxu0 %v243
        %289 = vmatprep.subr.mxu0 %v246
        %290 = vmatpush1.msra.mxu0 %v245
        %291 = vmatprep.subr.mxu0 %v248
        %292 = vmatpush1.msra.mxu0 %v247
        %293 = vmatprep.subr.mxu0 %v250
        %294 = vmatpush1.msra.mxu0 %v249
        %295 = vmatprep.subr.mxu0 %v252
        %296 = vmatpush1.msra.mxu0 %v251
        %297 = vmatprep.subr.mxu0 0.0
        %298 = vmatpush1.msra.mxu0 0.0
        %299 = vmatprep.subr.mxu0 0.0
        %300 = vmatpush1.msra.mxu0 0.0
        %301 = vmatprep.subr.mxu0 0.0
        %302 = vmatpush1.msra.mxu0 0.0
        %303 = vmatprep.subr.mxu0 0.0
        %304 = vmatpush1.msra.mxu0 0.0
        %305 = vmatprep.subr.mxu0 0.0
        %306 = vmatpush1.msra.mxu0 0.0
        %307 = vmatprep.subr.mxu0 0.0
        %308 = vmatpush1.msra.mxu0 0.0
        %309 = vmatprep.subr.mxu0 0.0
        %310 = vmatpush1.msra.mxu0 0.0
        %311 = vmatprep.subr.mxu0 0.0
        %312 = vmatpush1.msra.mxu0 0.0
        %313 = vmatprep.subr.mxu0 0.0
        %314 = vmatpush1.msra.mxu0 0.0
        %315 = vmatprep.subr.mxu0 0.0
        %316 = vmatpush1.msra.mxu0 0.0
        %317 = vmatprep.subr.mxu0 0.0
        %318 = vmatpush1.msra.mxu0 0.0
        %319 = vmatprep.subr.mxu0 0.0
        %320 = vmatpush1.msra.mxu0 0.0
        %321 = vmatprep.subr.mxu0 0.0
        %322 = vmatpush1.msra.mxu0 0.0
        %323 = vmatprep.subr.mxu0 0.0
        %324 = vmatpush1.msra.mxu0 0.0
        %325 = vmatprep.subr.mxu0 0.0
        %326 = vmatpush1.msra.mxu0 0.0
        %327 = vmatprep.subr.mxu0 0.0
        %328 = vmatpush1.msra.mxu0 0.0
        %329 = vmatprep.mubr.f32.mxu0 0.0
        %330 = vmatmul.mubr.f32.gmra.mrb[0].mxu0 %v219
        %v331 = vpop.f32.mrb[0].mxu0
        %v332 = vadd.f32 %v258, %v331
        %v333 = vpop.f32.mrb[0].mxu0
        %v334 = vadd.f32 %v258, %v333
        %335 = vmatprep.mubr.f32.mxu0 0.0
        %336 = vmatmul.mubr.f32.gmra.mrb[0].mxu0 %v220
        %v337 = vpop.f32.mrb[0].mxu0
        %v338 = vadd.f32 %v263, %v337
        %v339 = vpop.f32.mrb[0].mxu0
        %v340 = vadd.f32 %v263, %v339
        %341 = vdwg.mxu0
        %342 = vst [vmem:[%s217] sm:$0xff] %v332
        %343 = vst [vmem:[%s217 + $0x8] sm:$0xff] %v334
        %344 = vst [vmem:[%s217 + $0x10] sm:$0xf] %v338
        %345 = vst [vmem:[%s217 + $0x18] sm:$0xf] %v340
        %s346 = smul.u32 2, %s22
        %p347 = scmp.lt.s32.totalorder %s21, 1
        %s348 = scalar_select %p347, %s21, 1
        %p349 = scmp.lt.s32.totalorder %s346, 1
        %s350 = scalar_select %p349, %s346, 1
        %s351 = smul.addr %s348, 4
        %s352 = sadd.s32 %s350, %s351
        %s353 = smul.addr %s352, 8
        %s354 = scalar_lea.vmem %s3, %s353
        // Predicated region
        $region37: #{tpu_custom_call.1} parent=31 // pred_check
          %p355 = pneg %p119
        $region38: #{tpu_custom_call.1} parent=31 // pred_check_branch
          %357 = sbr.rel (%p355) target = $region40
        $region39: #{tpu_custom_call.1} parent=31 // pred_region
          %s358 = smul.u32 2, %s22
        $region40: #{tpu_custom_call.1} parent=31 // pred_fallthru
          _
      $region32: #{tpu_custom_call.1} parent=5 // pred_fallthru
        _
      %p359 = scmp.le.s32.totalorder 2, %s12
      // Predicated region
      $region41: #{tpu_custom_call.1} parent=5 // pred_check
        %p360 = pneg %p359
      $region42: #{tpu_custom_call.1} parent=5 // pred_check_branch
        %362 = sbr.rel (%p360) target = $region44
      $region43: #{tpu_custom_call.1} parent=5 // pred_region
        %s363 = ssub.s32 %s12, 2
        // Predicated region
        $region45: #{tpu_custom_call.1} parent=43 // pred_check
          %p364 = pneg %p125
        $region46: #{tpu_custom_call.1} parent=43 // pred_check_branch
          %366 = sbr.rel (%p364) target = $region48
        $region47: #{tpu_custom_call.1} parent=43 // pred_region
          %s367 = smul.u32 2, %s24
          %p368 = scmp.lt.s32.totalorder %s23, 1
          %s369 = scalar_select %p368, %s23, 1
          %p370 = scmp.lt.s32.totalorder %s367, 1
          %s371 = scalar_select %p370, %s367, 1
          %s372 = smul.addr %s369, 4
          %s373 = sadd.s32 %s371, %s372
          %s374 = smul.addr %s373, 8
          %s375 = scalar_lea.vmem %s3, %s374
        $region48: #{tpu_custom_call.1} parent=43 // pred_fallthru
          _
      $region44: #{tpu_custom_call.1} parent=5 // pred_fallthru
        _
    $region6: #{tpu_custom_call.1} parent=1 // loop_footer
      %s16 = sadd.s32 1, %s12
    $region7: #{tpu_custom_call.1} parent=1 // loop_footer_branch
      %11 = sbr.rel target = $region3
    $region8: #{tpu_custom_call.1} parent=1 // loop_exit
      _
    %376 = vsyncpa [#allocation3], 1
    %s377 = scalar_lea.sflag [#allocation3], 1
    %378 = vsyncpa %s377, 1

</llo_original>
